<compile_context>
chip_gen: v5e
topology: v5e:2x2
jax: 0.10.0
libtpu: 0.0.40
codegen_flags: <defaults>
</compile_context>

<pallas_src>
import jax
import jax.numpy as jnp
from jax.experimental import pallas as pl
from jax.experimental.pallas import tpu as pltpu


def _make_chunked_dma_copy_kernel(bounds):
    """Kernel factory: copy static row-chunks of a 2D HBM array to HBM output."""

    def kernel(x_hbm, o_hbm, sems):
        copies = []
        # Issue all chunk DMAs first so they are concurrently in flight.
        for c, (start, size) in enumerate(bounds):
            cp = pltpu.make_async_copy(
                x_hbm.at[pl.ds(start, size), :],
                o_hbm.at[pl.ds(start, size), :],
                sems.at[c],
            )
            cp.start()
            copies.append(cp)
        # Then wait for all of them.
        for cp in copies:
            cp.wait()

    return kernel


def _full_dma_copy_kernel(x_hbm, o_hbm, sem):
    # Whole-array HBM->HBM DMA: works for any shape/size, zero VMEM footprint.
    cp = pltpu.make_async_copy(x_hbm, o_hbm, sem.at[0])
    cp.start()
    cp.wait()


def default_message_module(x):
    """Identity message module implemented as HBM->HBM DMA copy kernel(s)."""
    orig_shape = x.shape
    n = x.size
    if n == 0:
        return x  # nothing to copy (guard against empty feature maps)

    # TODO(synk): if the caller can donate x, return x directly (or alias via
    # input_output_aliases={0: 0}) and skip the copy entirely; kept as a real
    # copy because the output must be independent of a still-live input here.

    itemsize = jnp.dtype(x.dtype).itemsize
    total_bytes = n * itemsize
    cost = pl.CostEstimate(flops=0, transcendentals=0,
                           bytes_accessed=2 * total_bytes)

    # Widest lane-dense column count (multiple of 128) dividing n exactly.
    cols = 0
    for c in (4096, 2048, 1024, 512, 256, 128):
        if n % c == 0:
            cols = c
            break

    if cols == 0:
        # Ragged size (not divisible by 128): single whole-array DMA on the
        # original shape -- no reshape, no alignment constraints, no VMEM.
        return pl.pallas_call(
            _full_dma_copy_kernel,
            out_shape=jax.ShapeDtypeStruct(orig_shape, x.dtype),
            in_specs=[pl.BlockSpec(memory_space=pl.ANY)],
            out_specs=pl.BlockSpec(memory_space=pl.ANY),
            scratch_shapes=[pltpu.SemaphoreType.DMA((1,))],
            cost_estimate=cost,
        )(x)

    rows = n // cols
    x2d = x.reshape(rows, cols)  # metadata-only for default-layout arrays

    # Split into up to 8 concurrent DMAs of roughly >=4 MiB each, with chunk
    # starts aligned to the sublane tile (8 rows f32 / 16 bf16 / 32 int8) so
    # every DMA except possibly the last is tile-aligned.
    sub = max(8, 32 // itemsize)
    target_chunk_bytes = 4 * 1024 * 1024
    want = max(1, min(8, pl.cdiv(total_bytes, target_chunk_bytes), rows))
    chunk_rows = pl.cdiv(rows, want)
    chunk_rows = min(rows, pl.cdiv(chunk_rows, sub) * sub)

    bounds = []
    start = 0
    while start < rows:
        size = min(chunk_rows, rows - start)
        bounds.append((start, size))
        start += size

    out2d = pl.pallas_call(
        _make_chunked_dma_copy_kernel(bounds),
        out_shape=jax.ShapeDtypeStruct((rows, cols), x2d.dtype),
        in_specs=[pl.BlockSpec(memory_space=pl.ANY)],
        out_specs=pl.BlockSpec(memory_space=pl.ANY),
        scratch_shapes=[pltpu.SemaphoreType.DMA((len(bounds),))],
        cost_estimate=cost,
    )(x2d)

    return out2d.reshape(orig_shape)


if __name__ == "__main__":
    key = jax.random.PRNGKey(0)
    # Small NCHW input consistent with a typical message-passing feature map.
    x = jax.random.normal(key, (2, 4, 16, 16), dtype=jnp.float32)

    y = default_message_module(x)
    y = jax.block_until_ready(y)
    assert y.shape == x.shape and y.dtype == x.dtype
    assert bool(jnp.all(y == x))

    # Also exercise the ragged (non-128-divisible) whole-array DMA path.
    key2 = jax.random.PRNGKey(0)
    x2 = jax.random.normal(key2, (3, 5, 7), dtype=jnp.float32)
    y2 = default_message_module(x2)
    y2 = jax.block_until_ready(y2)
    assert y2.shape == x2.shape and y2.dtype == x2.dtype
    assert bool(jnp.all(y2 == x2))

    print("KERNEL_OK")
</pallas_src>

<mosaic_0001>
module attributes {stable_mosaic.version = 11 : i64} {
  func.func @kernel(%arg0: memref<1x2048xf32, #tpu.memory_space<any>>, %arg1: memref<1x2048xf32, #tpu.memory_space<any>>, %arg2: memref<1x!tpu.dma_semaphore, #tpu.memory_space<semaphore_mem>>) attributes {dimension_semantics = [], scalar_prefetch = 0 : i64, scratch_operands = 1 : i64, tpu.core_type = #tpu.core_type<tc>} {
    %c0_i32 = arith.constant 0 : i32
    %c0_i32_0 = arith.constant 0 : i32
    %c0_i32_1 = arith.constant 0 : i32
    %0 = tpu.memref_slice %arg0[%c0_i32_0, %c0_i32_1] : memref<1x2048xf32, #tpu.memory_space<any>> -> memref<1x2048xf32, #tpu.memory_space<any>>
    %c0_i32_2 = arith.constant 0 : i32
    %c0_i32_3 = arith.constant 0 : i32
    %1 = tpu.memref_slice %arg1[%c0_i32_2, %c0_i32_3] : memref<1x2048xf32, #tpu.memory_space<any>> -> memref<1x2048xf32, #tpu.memory_space<any>>
    %2 = tpu.memref_slice %arg2[%c0_i32] : memref<1x!tpu.dma_semaphore, #tpu.memory_space<semaphore_mem>> -> memref<1x!tpu.dma_semaphore, #tpu.memory_space<semaphore_mem>>
    %3 = tpu.memref_squeeze %2 : memref<1x!tpu.dma_semaphore, #tpu.memory_space<semaphore_mem>> -> memref<!tpu.dma_semaphore, #tpu.memory_space<semaphore_mem>>
    tpu.enqueue_dma source(%0 : memref<1x2048xf32, #tpu.memory_space<any>>) target(%1 : memref<1x2048xf32, #tpu.memory_space<any>>) target_semaphore(%3 : memref<!tpu.dma_semaphore, #tpu.memory_space<semaphore_mem>>)
    %c0_i32_4 = arith.constant 0 : i32
    %c0_i32_5 = arith.constant 0 : i32
    %c0_i32_6 = arith.constant 0 : i32
    %4 = tpu.memref_slice %arg0[%c0_i32_5, %c0_i32_6] : memref<1x2048xf32, #tpu.memory_space<any>> -> memref<1x2048xf32, #tpu.memory_space<any>>
    %c0_i32_7 = arith.constant 0 : i32
    %c0_i32_8 = arith.constant 0 : i32
    %5 = tpu.memref_slice %arg1[%c0_i32_7, %c0_i32_8] : memref<1x2048xf32, #tpu.memory_space<any>> -> memref<1x2048xf32, #tpu.memory_space<any>>
    %6 = tpu.memref_slice %arg2[%c0_i32_4] : memref<1x!tpu.dma_semaphore, #tpu.memory_space<semaphore_mem>> -> memref<1x!tpu.dma_semaphore, #tpu.memory_space<semaphore_mem>>
    %7 = tpu.memref_squeeze %6 : memref<1x!tpu.dma_semaphore, #tpu.memory_space<semaphore_mem>> -> memref<!tpu.dma_semaphore, #tpu.memory_space<semaphore_mem>>
    tpu.wait_dma2 semaphore(%7 : memref<!tpu.dma_semaphore, #tpu.memory_space<semaphore_mem>>) src(%4 : memref<1x2048xf32, #tpu.memory_space<any>>) dst(%5 : memref<1x2048xf32, #tpu.memory_space<any>>)
    return
  }
}

</mosaic_0001>

<llo_original>
// kernel: tpu_custom_call.1
$region0: #{tpu_custom_call.1}
  #allocation0 [shape = 'u32[]', space=smem, size = 0x4, offset = 0x4, fixed_abs, tag = 'smem constant byte address 0x4 - core index']
  #allocation1 [shape = 'u32[72,128]{1,0:T(1,128)}', space=vmem, size = 0x9000, scoped, tag = 'internal scratch']
  #allocation2 [shape = 's32[1]{0}', space=sflag, size = 0x4, scoped, tag = 'scratch operand']
  #allocation3 [shape = 's32[]', space=sflag, size = 0x4, offset = 0, fixed_abs, tag = 'sflag constant byte address 0x0 - dummy sync flag']
  #allocation4 [shape = 'u32[0]{0}', space=smem, size = 0, offset = 0, fixed_abs, tag = 'smem constant byte address 0x0 - null']
  %s0 = inlined_call_operand.hbm [shape: f32[1,2048], index: 0, kind: input, shape index: {}]
  %s1 = inlined_call_operand.hbm [shape: f32[1,2048], index: 1, kind: output, shape index: {}]
  %s2 = sld [smem:[#allocation0]]
  $region2: #{tpu_custom_call.1} parent=0
    _
  %s4 = ssub.s32 1, %s2
  %s5 = scalar_select 0, %s4, %s2
  %s7 = sshll.u32 1, 14
  %s8 = sxor.u32 4294967295, %s7
  %s10 = sshll.u32 %s0, 4
  %s11 = int_to_ptr.hbm [resolvable:$true] %s10
  %s12 = sshll.u32 %s1, 4
  %s13 = int_to_ptr.hbm [resolvable:$true] %s12
  %16 = dma.general %s11, 256, %s13, [#allocation2], [#allocation3], [#allocation4], 0, 0
  %s17 = smul.u32 1, 16
  %s18 = sshll.u32 %s17, 4
  %19 = dma.done [#allocation2], %s18
  %20 = vsyncmov [#allocation2]
  %s21 = vpop.sfrf %20
  %p22 = scmp.eq.s32.totalorder %s21, 0
  %p23 = pneg %p22
  %25 = shalt.err (%p23)

</llo_original>
